<compile_context>
chip_gen: v5e
topology: v5e:2x2
jax: 0.10.0
libtpu: 0.0.40
codegen_flags: <defaults>
</compile_context>

<pallas_src>
import jax
import jax.numpy as jnp
from jax.experimental import pallas as pl
from jax.experimental.pallas import tpu as pltpu

# ---------------- config (mirrors Config defaults) ----------------
N_INSTANCES = 2
N_FEATURES = 5
N_HIDDEN = 2
BATCH = 8


def model_kernel(feat_ref, w_ref, b_ref, out_ref):
    """feat_ref: (B, I*F) features (instance blocks contiguous in lanes)
       w_ref:    (I, H, F) per-instance weights
       b_ref:    (1, I*F) final bias, flattened the same way
       out_ref:  (B, I*F) relu(out + b_final)"""
    n_inst, n_hidden, n_feat = w_ref.shape
    feat = feat_ref[...]                                   # (B, I*F), one load

    outs = []
    for i in range(n_inst):                                # static unroll (I is tiny)
        x = feat[:, i * n_feat:(i + 1) * n_feat]           # (B, F) lane slice
        w = w_ref[i]                                       # (H, F) leading-axis load
        # hidden = x @ w.T  (contract features)  -> (B, H)
        hidden = jnp.einsum('bf,hf->bh', x, w,
                            preferred_element_type=jnp.float32)
        # out_i = hidden @ w (contract hidden)   -> (B, F)
        out_i = jnp.einsum('bh,hf->bf', hidden, w,
                           preferred_element_type=jnp.float32)
        outs.append(out_i)

    out = jnp.concatenate(outs, axis=-1)                   # (B, I*F), lane concat
    out_ref[...] = jnp.maximum(out + b_ref[...], 0.0)      # ReLU(out + b_final)


def model_forward(features, W, b_final):
    """features: (batch, n_instances, n_features)
       W:        (n_instances, n_hidden, n_features)
       b_final:  (n_instances, n_features)
       returns relu(einsum(einsum(features, W), W) + b_final), same shape as features."""
    B, I, F = features.shape
    Iw, H, Fw = W.shape
    assert (Iw, Fw) == (I, F)

    # Free (contiguous) reshapes — no transposes, no extra HBM copies.
    feat2 = features.reshape(B, I * F)
    b2 = b_final.reshape(1, I * F)

    out2 = pl.pallas_call(
        model_kernel,
        out_shape=jax.ShapeDtypeStruct((B, I * F), jnp.float32),
        grid=(1,),  # single invocation: all instances handled in one kernel step
        in_specs=[
            pl.BlockSpec((B, I * F), lambda i: (0, 0)),
            pl.BlockSpec((I, H, F), lambda i: (0, 0, 0)),
            pl.BlockSpec((1, I * F), lambda i: (0, 0)),
        ],
        out_specs=pl.BlockSpec((B, I * F), lambda i: (0, 0)),
        compiler_params=pltpu.CompilerParams(
            dimension_semantics=("arbitrary",)),
    )(feat2, W, b2)

    return out2.reshape(B, I, F)


def _reference_forward(features, W, b_final):
    """Pure-JAX replica of the PyTorch Model.forward for verification."""
    hidden = jnp.einsum('bif,ihf->bih', features, W)
    out = jnp.einsum('bih,ihf->bif', hidden, W)
    return jax.nn.relu(out + b_final[None, :, :])


if __name__ == "__main__":
    key = jax.random.PRNGKey(0)
    k_w, k_feat, k_mask = jax.random.split(key, 3)

    # xavier-normal-like init for W: (I, H, F)
    std_w = (2.0 / (N_HIDDEN + N_FEATURES)) ** 0.5
    W = std_w * jax.random.normal(k_w, (N_INSTANCES, N_HIDDEN, N_FEATURES), jnp.float32)
    b_final = jnp.zeros((N_INSTANCES, N_FEATURES), jnp.float32)

    # features in [0,1) with some sparsity, like generate_batch (uncorrelated path)
    feat = jax.random.uniform(k_feat, (BATCH, N_INSTANCES, N_FEATURES), jnp.float32)
    present = jax.random.uniform(k_mask, (BATCH, N_INSTANCES, N_FEATURES)) <= 0.7
    features = jnp.where(present, feat, 0.0)

    out = model_forward(features, W, b_final)
    jax.block_until_ready(out)

    ref = _reference_forward(features, W, b_final)
    assert out.shape == ref.shape
    assert jnp.allclose(out, ref, atol=1e-5, rtol=1e-5)

    print("KERNEL_OK")
</pallas_src>

<mosaic_0001>
module attributes {stable_mosaic.version = 11 : i64} {
  func.func @model_kernel(%arg0: i32, %arg1: memref<8x10xf32, #tpu.memory_space<vmem>>, %arg2: memref<2x2x5xf32, #tpu.memory_space<vmem>>, %arg3: memref<1x10xf32, #tpu.memory_space<vmem>>, %arg4: memref<8x10xf32, #tpu.memory_space<vmem>>) attributes {dimension_semantics = [#tpu.dimension_semantics<arbitrary>], iteration_bounds = array<i64: 1>, scalar_prefetch = 0 : i64, scratch_operands = 0 : i64, tpu.core_type = #tpu.core_type<tc>, window_params = [{pipeline_mode = #tpu.pipeline_mode<synchronous>, transform_indices = @transform_0, window_bounds = array<i64: 8, 10>}, {pipeline_mode = #tpu.pipeline_mode<synchronous>, transform_indices = @transform_1, window_bounds = array<i64: 2, 2, 5>}, {pipeline_mode = #tpu.pipeline_mode<synchronous>, transform_indices = @transform_2, window_bounds = array<i64: 1, 10>}, {pipeline_mode = #tpu.pipeline_mode<synchronous>, transform_indices = @transform_3, window_bounds = array<i64: 8, 10>}]} {
    %c0 = arith.constant 0 : index
    %c0_0 = arith.constant 0 : index
    %0 = vector.load %arg1[%c0, %c0_0] : memref<8x10xf32, #tpu.memory_space<vmem>>, vector<8x10xf32>
    %1 = vector.extract_strided_slice %0 {offsets = [0, 0], sizes = [8, 5], strides = [1, 1]} : vector<8x10xf32> to vector<8x5xf32>
    %c0_1 = arith.constant 0 : index
    %c0_2 = arith.constant 0 : index
    %c0_3 = arith.constant 0 : index
    %2 = vector.load %arg2[%c0_1, %c0_2, %c0_3] : memref<2x2x5xf32, #tpu.memory_space<vmem>>, vector<1x2x5xf32>
    %3 = vector.shape_cast %2 : vector<1x2x5xf32> to vector<2x5xf32>
    "tpu.trace_start"() <{level = 10 : i32, message = "bf,hf->bh"}> : () -> ()
    %cst = arith.constant dense<0.000000e+00> : vector<8x2xf32>
    %4 = tpu.matmul %1, %3, %cst {dimension_numbers = #tpu.dot_dimension_numbers<[1], [1], [0], [0], [0, 0, 1, 0], [], []>} : vector<8x5xf32>, vector<2x5xf32>, vector<8x2xf32> -> vector<8x2xf32>
    "tpu.trace_stop"() : () -> ()
    "tpu.trace_start"() <{level = 10 : i32, message = "bh,hf->bf"}> : () -> ()
    %cst_4 = arith.constant dense<0.000000e+00> : vector<8x5xf32>
    %5 = tpu.matmul %4, %3, %cst_4 {dimension_numbers = #tpu.dot_dimension_numbers<[1], [0], [0], [1], [0, 0, 1, 1], [], []>} : vector<8x2xf32>, vector<2x5xf32>, vector<8x5xf32> -> vector<8x5xf32>
    "tpu.trace_stop"() : () -> ()
    %6 = vector.extract_strided_slice %0 {offsets = [0, 5], sizes = [8, 5], strides = [1, 1]} : vector<8x10xf32> to vector<8x5xf32>
    %c1 = arith.constant 1 : index
    %c0_5 = arith.constant 0 : index
    %c0_6 = arith.constant 0 : index
    %7 = vector.load %arg2[%c1, %c0_5, %c0_6] : memref<2x2x5xf32, #tpu.memory_space<vmem>>, vector<1x2x5xf32>
    %8 = vector.shape_cast %7 : vector<1x2x5xf32> to vector<2x5xf32>
    "tpu.trace_start"() <{level = 10 : i32, message = "bf,hf->bh"}> : () -> ()
    %cst_7 = arith.constant dense<0.000000e+00> : vector<8x2xf32>
    %9 = tpu.matmul %6, %8, %cst_7 {dimension_numbers = #tpu.dot_dimension_numbers<[1], [1], [0], [0], [0, 0, 1, 0], [], []>} : vector<8x5xf32>, vector<2x5xf32>, vector<8x2xf32> -> vector<8x2xf32>
    "tpu.trace_stop"() : () -> ()
    "tpu.trace_start"() <{level = 10 : i32, message = "bh,hf->bf"}> : () -> ()
    %cst_8 = arith.constant dense<0.000000e+00> : vector<8x5xf32>
    %10 = tpu.matmul %9, %8, %cst_8 {dimension_numbers = #tpu.dot_dimension_numbers<[1], [0], [0], [1], [0, 0, 1, 1], [], []>} : vector<8x2xf32>, vector<2x5xf32>, vector<8x5xf32> -> vector<8x5xf32>
    "tpu.trace_stop"() : () -> ()
    %11 = tpu.concatenate %5, %10 in 1 : vector<8x5xf32>, vector<8x5xf32> -> vector<8x10xf32>
    %c0_9 = arith.constant 0 : index
    %c0_10 = arith.constant 0 : index
    %12 = vector.load %arg3[%c0_9, %c0_10] : memref<1x10xf32, #tpu.memory_space<vmem>>, vector<1x10xf32>
    %13 = vector.broadcast %12 : vector<1x10xf32> to vector<8x10xf32>
    %14 = arith.addf %11, %13 : vector<8x10xf32>
    %cst_11 = arith.constant 0.000000e+00 : f32
    %15 = vector.broadcast %cst_11 : f32 to vector<8x10xf32>
    %16 = arith.maximumf %14, %15 : vector<8x10xf32>
    %c0_12 = arith.constant 0 : index
    %c0_13 = arith.constant 0 : index
    %17 = vector.load %arg4[%c0_12, %c0_13] : memref<8x10xf32, #tpu.memory_space<vmem>>, vector<8x10xf32>
    tpu.vector_store %arg4[%c0_12, %c0_13], %16 {strides = array<i32>} : memref<8x10xf32, #tpu.memory_space<vmem>>, vector<8x10xf32>,
    return
  }
  func.func @transform_0(%arg0: i32) -> (i32, i32) {
    %c0_i32 = arith.constant 0 : i32
    %c0_i32_0 = arith.constant 0 : i32
    %c0_i32_1 = arith.constant 0 : i32
    return %c0_i32, %c0_i32_0 : i32, i32
  }
  func.func @transform_1(%arg0: i32) -> (i32, i32, i32) {
    %c0_i32 = arith.constant 0 : i32
    %c0_i32_0 = arith.constant 0 : i32
    %c0_i32_1 = arith.constant 0 : i32
    %c0_i32_2 = arith.constant 0 : i32
    return %c0_i32, %c0_i32_0, %c0_i32_1 : i32, i32, i32
  }
  func.func @transform_2(%arg0: i32) -> (i32, i32) {
    %c0_i32 = arith.constant 0 : i32
    %c0_i32_0 = arith.constant 0 : i32
    %c0_i32_1 = arith.constant 0 : i32
    return %c0_i32, %c0_i32_0 : i32, i32
  }
  func.func @transform_3(%arg0: i32) -> (i32, i32) {
    %c0_i32 = arith.constant 0 : i32
    %c0_i32_0 = arith.constant 0 : i32
    %c0_i32_1 = arith.constant 0 : i32
    return %c0_i32, %c0_i32_0 : i32, i32
  }
}

</mosaic_0001>

<llo_original>
// kernel: tpu_custom_call.1
$region0: #{tpu_custom_call.1}
  #allocation0 [shape = 'u32[]', space=smem, size = 0x4, offset = 0x4, fixed_abs, tag = 'smem constant byte address 0x4 - core index']
  #allocation1 [shape = 'u32[72,128]{1,0:T(1,128)}', space=vmem, size = 0x9000, scoped, tag = 'internal scratch']
  %s0 = inlined_call_operand.hbm [shape: f32[8,10], index: 0, kind: input, shape index: {}]
  %s1 = inlined_call_operand.hbm [shape: f32[2,2,5], index: 1, kind: input, shape index: {}]
  %s2 = inlined_call_operand.vmem [shape: f32[1,10], index: 2, kind: input, shape index: {}]
  %s3 = inlined_call_operand.hbm [shape: f32[8,10], index: 3, kind: output, shape index: {}]
  %s4 = sld [smem:[#allocation0]]
  $region30: #{tpu_custom_call.1} parent=0
    _
  %s6 = ssub.s32 1, %s4
  %s7 = scalar_select 0, %s6, %s4
  $region1: #{tpu_custom_call.1} parent=0
    #allocation2 [shape = 'u8[4096]{0}', space=vmem, size = 0x1000, scoped, tag = 'input window, operand 0, single buffered']
    #allocation3 [shape = 's32[1]{0}', space=sflag, size = 0x4, scoped, tag = 'scoped memory for tpu_custom_call.1']
    #allocation4 [shape = 's32[1]{0}', space=sflag, size = 0x4, scoped, tag = 'scoped memory for tpu_custom_call.1']
    #allocation5 [shape = 'u8[2048]{0}', space=vmem, size = 0x800, scoped, tag = 'input window, operand 1, single buffered']
    #allocation6 [shape = 's32[1]{0}', space=sflag, size = 0x4, scoped, tag = 'scoped memory for tpu_custom_call.1']
    #allocation7 [shape = 'u8[4096]{0}', space=vmem, size = 0x1000, scoped, tag = 'output window, operand 0, single buffered']
    %8 = vsyncpa [#allocation3], 0
    %9 = vsyncpa [#allocation6], 0
    %10 = vsyncpa [#allocation4], 0
    // Predicated region
    $region2: #{tpu_custom_call.1} parent=1 // pred_check
      _
    $region3: #{tpu_custom_call.1} parent=1 // pred_check_branch
      %12 = sbr.rel (0) target = $region5
    $region4: #{tpu_custom_call.1} parent=1 // pred_region
      %14 = vsyncadd [#allocation3], 0
      %s16 = sshll.u32 %s0, 4
      %s17 = int_to_ptr.hbm [resolvable:$true] %s16
      %s18 = sshll.u32 [#allocation2], 4
      %s19 = int_to_ptr.vmem [resolvable:$true] %s18
      %21 = dma.hbm_to_vmem [thread:$0]  %s17, 128, %s19, [#allocation3]
    $region5: #{tpu_custom_call.1} parent=1 // pred_fallthru
      _
    // Predicated region
    $region6: #{tpu_custom_call.1} parent=1 // pred_check
      _
    $region7: #{tpu_custom_call.1} parent=1 // pred_check_branch
      %23 = sbr.rel (0) target = $region9
    $region8: #{tpu_custom_call.1} parent=1 // pred_region
      %25 = vsyncadd [#allocation6], 0
      %s26 = sshll.u32 %s1, 4
      %s27 = int_to_ptr.hbm [resolvable:$true] %s26
      %s28 = sshll.u32 [#allocation5], 4
      %s29 = int_to_ptr.vmem [resolvable:$true] %s28
      %34 = dma.hbm_to_vmem [thread:$0]  %s27, 64, %s29, [#allocation6], 32, 32, 2
    $region9: #{tpu_custom_call.1} parent=1 // pred_fallthru
      _
    // Predicated region
    $region10: #{tpu_custom_call.1} parent=1 // pred_check
      _
    $region11: #{tpu_custom_call.1} parent=1 // pred_check_branch
      %36 = sbr.rel (0) target = $region13
    $region12: #{tpu_custom_call.1} parent=1 // pred_region
      _
    $region13: #{tpu_custom_call.1} parent=1 // pred_fallthru
      _
    // Predicated region
    $region14: #{tpu_custom_call.1} parent=1 // pred_check
      _
    $region15: #{tpu_custom_call.1} parent=1 // pred_check_branch
      %38 = sbr.rel (0) target = $region17
    $region16: #{tpu_custom_call.1} parent=1 // pred_region
      %40 = dma.done [#allocation3], 128
    $region17: #{tpu_custom_call.1} parent=1 // pred_fallthru
      _
    // Predicated region
    $region18: #{tpu_custom_call.1} parent=1 // pred_check
      _
    $region19: #{tpu_custom_call.1} parent=1 // pred_check_branch
      %42 = sbr.rel (0) target = $region21
    $region20: #{tpu_custom_call.1} parent=1 // pred_region
      %44 = dma.done [#allocation6], 64
    $region21: #{tpu_custom_call.1} parent=1 // pred_fallthru
      _
    %v45 = vld [vmem:[#allocation2] sm:$0xff]
    %v46 = vld [vmem:[#allocation5] sm:$0x3]
    %vm47 = vcmask 39936
    %v49 = vsel %vm47, %v45, 0
    %v52 = vsel %vm47, %v46, 0
    %54 = vmatpush.xpose.msra.mxu0 0.0
    %55 = vmatpush.xpose.msra.mxu0 0.0
    %56 = vmatpush.xpose.msra.mxu0 0.0
    %57 = vmatpush.xpose.msra.mxu0 0.0
    %58 = vmatpush.xpose.msra.mxu0 0.0
    %59 = vmatpush.xpose.msra.mxu0 0.0
    %60 = vmatpush.xpose.msra.mxu0 0.0
    %61 = vmatpush.xpose.msra.mxu0 0.0
    %62 = vmatpush.xpose.msra.mxu0 0.0
    %63 = vmatpush.xpose.msra.mxu0 0.0
    %64 = vmatpush.xpose.msra.mxu0 0.0
    %65 = vmatpush.xpose.msra.mxu0 0.0
    %66 = vmatpush.xpose.msra.mxu0 0.0
    %67 = vmatpush.xpose.msra.mxu0 0.0
    %68 = vmatpush.xpose.msra.mxu0 0.0
    %69 = vmatpush.xpose.msra.mxu0 %v52
    %70 = vmatmul.f32.gmra.mxu0 %v49
    %v71 = vpop.f32.mrf.mxu0
    %v72 = vadd.f32 0.0, %v71
    %73 = vdwg.mxu0
    %vm74 = vcmask 15360
    %v76 = vsel %vm74, %v72, 0
    %vm78 = vcmask 1041408
    %v79 = vsel %vm78, %v46, 0
    %81 = vmatpush.msra.mxu0 0.0
    %82 = vmatpush.msra.mxu0 0.0
    %83 = vmatpush.msra.mxu0 0.0
    %84 = vmatpush.msra.mxu0 0.0
    %85 = vmatpush.msra.mxu0 0.0
    %86 = vmatpush.msra.mxu0 0.0
    %87 = vmatpush.msra.mxu0 0.0
    %88 = vmatpush.msra.mxu0 0.0
    %89 = vmatpush.msra.mxu0 0.0
    %90 = vmatpush.msra.mxu0 0.0
    %91 = vmatpush.msra.mxu0 0.0
    %92 = vmatpush.msra.mxu0 0.0
    %93 = vmatpush.msra.mxu0 0.0
    %94 = vmatpush.msra.mxu0 0.0
    %95 = vmatpush.msra.mxu0 0.0
    %96 = vmatpush.msra.mxu0 %v79
    %97 = vmatmul.f32.gmra.mxu0 %v76
    %v98 = vpop.f32.mrf.mxu0
    %v99 = vadd.f32 0.0, %v98
    %100 = vdwg.mxu0
    %s101 = scalar_lea.vmem [#allocation5], 2
    %v102 = vld [vmem:[%s101] sm:$0x3]
    %103 = vrot.lane.b32.xlu0 %v45, 123
    %v104 = vpop.permute.xlu0 %103
    %v105 = vsel %vm47, %v104, 0
    %v108 = vsel %vm47, %v102, 0
    %110 = vmatpush.xpose.msra.mxu0 0.0
    %111 = vmatpush.xpose.msra.mxu0 0.0
    %112 = vmatpush.xpose.msra.mxu0 0.0
    %113 = vmatpush.xpose.msra.mxu0 0.0
    %114 = vmatpush.xpose.msra.mxu0 0.0
    %115 = vmatpush.xpose.msra.mxu0 0.0
    %116 = vmatpush.xpose.msra.mxu0 0.0
    %117 = vmatpush.xpose.msra.mxu0 0.0
    %118 = vmatpush.xpose.msra.mxu0 0.0
    %119 = vmatpush.xpose.msra.mxu0 0.0
    %120 = vmatpush.xpose.msra.mxu0 0.0
    %121 = vmatpush.xpose.msra.mxu0 0.0
    %122 = vmatpush.xpose.msra.mxu0 0.0
    %123 = vmatpush.xpose.msra.mxu0 0.0
    %124 = vmatpush.xpose.msra.mxu0 0.0
    %125 = vmatpush.xpose.msra.mxu0 %v108
    %126 = vmatmul.f32.gmra.mxu0 %v105
    %v127 = vpop.f32.mrf.mxu0
    %v128 = vadd.f32 0.0, %v127
    %129 = vdwg.mxu0
    %v131 = vsel %vm74, %v128, 0
    %v133 = vsel %vm78, %v102, 0
    %135 = vmatpush.msra.mxu0 0.0
    %136 = vmatpush.msra.mxu0 0.0
    %137 = vmatpush.msra.mxu0 0.0
    %138 = vmatpush.msra.mxu0 0.0
    %139 = vmatpush.msra.mxu0 0.0
    %140 = vmatpush.msra.mxu0 0.0
    %141 = vmatpush.msra.mxu0 0.0
    %142 = vmatpush.msra.mxu0 0.0
    %143 = vmatpush.msra.mxu0 0.0
    %144 = vmatpush.msra.mxu0 0.0
    %145 = vmatpush.msra.mxu0 0.0
    %146 = vmatpush.msra.mxu0 0.0
    %147 = vmatpush.msra.mxu0 0.0
    %148 = vmatpush.msra.mxu0 0.0
    %149 = vmatpush.msra.mxu0 0.0
    %150 = vmatpush.msra.mxu0 %v133
    %151 = vmatmul.f32.gmra.mxu0 %v131
    %v152 = vpop.f32.mrf.mxu0
    %v153 = vadd.f32 0.0, %v152
    %154 = vdwg.mxu0
    %156 = vrot.lane.b32.xlu0 %v153, 5
    %v157 = vpop.permute.xlu0 %156
    %v159 = vsel %vm47, %v99, %v157
    %v160 = vld [vmem:[%s2] sm:$0x1]
    %v162 = vperm.slane %v160, 0
    %v164 = vadd.f32 %v159, %v162
    %v165 = vmax.f32 %v164, 0.0
    %vm166 = vcmask 80896
    %167 = vst.msk [vmem:[#allocation7] sm:$0xff] %vm166, %v165
    // Predicated region
    $region22: #{tpu_custom_call.1} parent=1 // pred_check
      _
    $region23: #{tpu_custom_call.1} parent=1 // pred_check_branch
      %169 = sbr.rel (0) target = $region25
    $region24: #{tpu_custom_call.1} parent=1 // pred_region
      %171 = vsyncadd [#allocation4], 0
      %s173 = sshll.u32 [#allocation7], 4
      %s174 = int_to_ptr.vmem [resolvable:$true] %s173
      %s175 = sshll.u32 %s3, 4
      %s176 = int_to_ptr.hbm [resolvable:$true] %s175
      %178 = dma.vmem_to_hbm [thread:$0]  %s174, 128, %s176, [#allocation4]
    $region25: #{tpu_custom_call.1} parent=1 // pred_fallthru
      _
    // Predicated region
    $region26: #{tpu_custom_call.1} parent=1 // pred_check
      _
    $region27: #{tpu_custom_call.1} parent=1 // pred_check_branch
      %180 = sbr.rel (0) target = $region29
    $region28: #{tpu_custom_call.1} parent=1 // pred_region
      %182 = dma.done [#allocation4], 128
    $region29: #{tpu_custom_call.1} parent=1 // pred_fallthru
      _
    %183 = vsyncpa [#allocation3], 1
    %184 = vsyncpa [#allocation6], 1
    %185 = vsyncpa [#allocation4], 1

</llo_original>
